<compile_context>
chip_gen: v5e
topology: v5e:2x2
jax: 0.10.0
libtpu: 0.0.40
codegen_flags: <defaults>
</compile_context>

<pallas_src>
import functools

import jax
import jax.numpy as jnp
from jax.experimental import pallas as pl
from jax.experimental.pallas import tpu as pltpu


def _laplacian_tv_kernel(mask_ref, x_ref, accz_ref, acch_ref, accw_ref, *,
                         shift_z, shift_h, shift_w):
    t = pl.program_id(1)

    # Per-core accumulator init on the first inner step.
    @pl.when(t == 0)
    def _init():
        accz_ref[...] = jnp.zeros_like(accz_ref)
        acch_ref[...] = jnp.zeros_like(acch_ref)
        accw_ref[...] = jnp.zeros_like(accw_ref)

    x = x_ref[...].astype(jnp.float32)      # (TN, Z, HW); no-op cast for f32 in

    # 0/1 validity masks, DMA'd once (constant block index) and kept resident.
    mz = mask_ref[0]                        # (Z, HW)
    mh = mask_ref[1]
    mw = mask_ref[2]

    # Left-shift-by-1 along Z, and by W / by 1 along the flattened (H, W) lane
    # axis, via XLU rolls (roll by size-1 == roll by -1).  Wrapped / cross-row
    # positions are zeroed by the masks — no misaligned shifted slices.
    dz = (pltpu.roll(x, shift=shift_z, axis=1) - x) * mz
    dh = (pltpu.roll(x, shift=shift_h, axis=2) - x) * mh
    dw = (pltpu.roll(x, shift=shift_w, axis=2) - x) * mw

    # Reduce only over the leading (non-vreg) axis -> pure vector adds; the
    # cross-lane/sublane reduction is deferred to the wrapper.
    accz_ref[...] += jnp.sum(dz * dz, axis=0, keepdims=True)
    acch_ref[...] += jnp.sum(dh * dh, axis=0, keepdims=True)
    accw_ref[...] += jnp.sum(dw * dw, axis=0, keepdims=True)


def laplacian_loss(x, *, target_block_bytes=2 << 20):
    """Pallas implementation of LaplacianLoss.forward for x of shape (B,S,Z,H,W)."""
    B, S, Z, H, W = x.shape
    N = B * S
    HW = H * W
    xr = x.reshape(N, Z, HW)               # contiguous reshape, no data movement

    # Core-parallel split of the volume axis (2 TensorCores on v7x).
    NC = 2 if N >= 2 else 1

    # Volumes per grid step: aim for ~2 MiB f32 blocks (>=512 KiB keeps the DMA
    # pipeline near HBM roofline), capped at the per-core share.
    vol_f32_bytes = Z * HW * 4
    TN = max(1, target_block_bytes // vol_f32_bytes)
    TN = min(TN, pl.cdiv(N, NC))
    # TODO(synk): for single volumes too large for VMEM, tile Z with a 1-plane halo.

    T = pl.cdiv(N, NC * TN)
    N_pad = NC * T * TN
    if N_pad != N:
        # All-zero padded volumes contribute exactly zero to every diff term.
        xr = jnp.pad(xr, ((0, N_pad - N), (0, 0), (0, 0)))

    # Validity masks (built once in the wrapper; resident in VMEM in-kernel).
    z_idx = jnp.arange(Z, dtype=jnp.int32)[:, None]
    hw_idx = jnp.arange(HW, dtype=jnp.int32)[None, :]
    mz = jnp.broadcast_to(z_idx < Z - 1, (Z, HW))            # valid z-diff rows
    mh = jnp.broadcast_to(hw_idx < (H - 1) * W, (Z, HW))     # valid h-diff cols
    mw = jnp.broadcast_to(hw_idx % W < W - 1, (Z, HW))       # valid w-diff cols
    masks = jnp.stack([mz, mh, mw]).astype(jnp.float32)      # (3, Z, HW)

    acc_shape = jax.ShapeDtypeStruct((NC, Z, HW), jnp.float32)
    acc_spec = pl.BlockSpec((1, Z, HW), lambda c, t: (c, 0, 0))

    kernel = functools.partial(
        _laplacian_tv_kernel,
        shift_z=Z - 1,        # == roll by -1 along Z (sublane axis)
        shift_h=HW - W,       # == roll by -W along flattened HW (lane axis)
        shift_w=HW - 1,       # == roll by -1 along flattened HW (lane axis)
    )

    # Explicit VMEM budget: 2x double-buffered input block + f32 temporaries
    # + masks + 3 resident accumulator blocks, clamped to be safe on v7x (64 MiB).
    block_bytes = TN * Z * HW * x.dtype.itemsize
    block_f32 = TN * Z * HW * 4
    vmem_need = 2 * block_bytes + 6 * block_f32 + 16 * Z * HW * 4 + (2 << 20)
    vmem_limit = int(min(max(vmem_need, 32 << 20), 48 << 20))

    elems = N_pad * Z * HW
    cost = pl.CostEstimate(
        flops=12 * elems,
        transcendentals=0,
        bytes_accessed=int(N_pad * Z * HW * x.dtype.itemsize
                           + (3 * NC + 3) * Z * HW * 4),
    )

    z_acc, h_acc, w_acc = pl.pallas_call(
        kernel,
        out_shape=(acc_shape, acc_shape, acc_shape),
        grid_spec=pltpu.PrefetchScalarGridSpec(
            num_scalar_prefetch=0,
            grid=(NC, T),
            in_specs=[
                # masks: constant block index -> fetched once, stays resident
                pl.BlockSpec((3, Z, HW), lambda c, t: (0, 0, 0)),
                # x: block of TN full volumes per step, per-core chunk of size T
                pl.BlockSpec((TN, Z, HW), lambda c, t: (c * T + t, 0, 0)),
            ],
            out_specs=(acc_spec, acc_spec, acc_spec),
        ),
        compiler_params=pltpu.CompilerParams(
            dimension_semantics=("parallel", "arbitrary"),
            vmem_limit_bytes=vmem_limit,
        ),
        cost_estimate=cost,
    )(masks, xr)

    # Cheap scalar glue: final reductions over (core, Z, HW) + normalization.
    z_tv = jnp.sum(z_acc)
    h_tv = jnp.sum(h_acc)
    w_tv = jnp.sum(w_acc)

    count_z = (Z - 1) * H * W
    count_h = Z * (H - 1) * W
    count_w = Z * H * (W - 1)

    return (2.0 * (z_tv / count_z + h_tv / count_h + w_tv / count_w)
            / (B * S))


def laplacian_loss_ref(x):
    """Pure-JAX reference mirroring the PyTorch module."""
    B, S, Z, H, W = x.shape
    xf = x.astype(jnp.float32)
    z_tv = jnp.sum((xf[:, :, 1:, :, :] - xf[:, :, :-1, :, :]) ** 2)
    h_tv = jnp.sum((xf[:, :, :, 1:, :] - xf[:, :, :, :-1, :]) ** 2)
    w_tv = jnp.sum((xf[:, :, :, :, 1:] - xf[:, :, :, :, :-1]) ** 2)
    count_z = (Z - 1) * H * W
    count_h = Z * (H - 1) * W
    count_w = Z * H * (W - 1)
    return 2.0 * (z_tv / count_z + h_tv / count_h + w_tv / count_w) / (B * S)


if __name__ == "__main__":
    key = jax.random.PRNGKey(0)
    # (batch, slice_num, Z, H, W)
    x = jax.random.normal(key, (2, 4, 8, 16, 16), dtype=jnp.float32)

    out = jax.jit(laplacian_loss)(x)
    out = jax.block_until_ready(out)

    ref = laplacian_loss_ref(x)
    assert jnp.allclose(out, ref, rtol=1e-5, atol=1e-5), (out, ref)

    print("KERNEL_OK")
</pallas_src>

<mosaic_0001>
module attributes {stable_mosaic.version = 11 : i64} {
  func.func @_laplacian_tv_kernel(%arg0: i32, %arg1: i32, %arg2: memref<3x8x256xf32, #tpu.memory_space<vmem>>, %arg3: memref<4x8x256xf32, #tpu.memory_space<vmem>>, %arg4: memref<1x8x256xf32, #tpu.memory_space<vmem>>, %arg5: memref<1x8x256xf32, #tpu.memory_space<vmem>>, %arg6: memref<1x8x256xf32, #tpu.memory_space<vmem>>) attributes {dimension_semantics = [#tpu.dimension_semantics<parallel>, #tpu.dimension_semantics<arbitrary>], iteration_bounds = array<i64: 2, 1>, scalar_prefetch = 0 : i64, scratch_operands = 0 : i64, tpu.core_type = #tpu.core_type<tc>, window_params = [{pipeline_mode = #tpu.pipeline_mode<synchronous>, transform_indices = @transform_0, window_bounds = array<i64: 3, 8, 256>}, {transform_indices = @transform_1, window_bounds = array<i64: 4, 8, 256>}, {transform_indices = @transform_2, window_bounds = array<i64: 1, 8, 256>}, {transform_indices = @transform_3, window_bounds = array<i64: 1, 8, 256>}, {transform_indices = @transform_4, window_bounds = array<i64: 1, 8, 256>}]} {
    %c0_i32 = arith.constant 0 : i32
    %0 = arith.cmpi eq, %arg1, %c0_i32 : i32
    %1 = arith.extui %0 : i1 to i32
    %c0_i32_0 = arith.constant 0 : i32
    %2 = arith.cmpi ne, %1, %c0_i32_0 : i32
    scf.if %2 {
      %cst_30 = arith.constant 0.000000e+00 : f32
      %43 = vector.broadcast %cst_30 : f32 to vector<1x8x256xf32>
      %c0_31 = arith.constant 0 : index
      %c0_32 = arith.constant 0 : index
      %c0_33 = arith.constant 0 : index
      %44 = vector.load %arg4[%c0_31, %c0_32, %c0_33] : memref<1x8x256xf32, #tpu.memory_space<vmem>>, vector<1x8x256xf32>
      tpu.vector_store %arg4[%c0_31, %c0_32, %c0_33], %43 {strides = array<i32>} : memref<1x8x256xf32, #tpu.memory_space<vmem>>, vector<1x8x256xf32>,
      %cst_34 = arith.constant 0.000000e+00 : f32
      %45 = vector.broadcast %cst_34 : f32 to vector<1x8x256xf32>
      %c0_35 = arith.constant 0 : index
      %c0_36 = arith.constant 0 : index
      %c0_37 = arith.constant 0 : index
      %46 = vector.load %arg5[%c0_35, %c0_36, %c0_37] : memref<1x8x256xf32, #tpu.memory_space<vmem>>, vector<1x8x256xf32>
      tpu.vector_store %arg5[%c0_35, %c0_36, %c0_37], %45 {strides = array<i32>} : memref<1x8x256xf32, #tpu.memory_space<vmem>>, vector<1x8x256xf32>,
      %cst_38 = arith.constant 0.000000e+00 : f32
      %47 = vector.broadcast %cst_38 : f32 to vector<1x8x256xf32>
      %c0_39 = arith.constant 0 : index
      %c0_40 = arith.constant 0 : index
      %c0_41 = arith.constant 0 : index
      %48 = vector.load %arg6[%c0_39, %c0_40, %c0_41] : memref<1x8x256xf32, #tpu.memory_space<vmem>>, vector<1x8x256xf32>
      tpu.vector_store %arg6[%c0_39, %c0_40, %c0_41], %47 {strides = array<i32>} : memref<1x8x256xf32, #tpu.memory_space<vmem>>, vector<1x8x256xf32>,
    } else {
    }
    %c0 = arith.constant 0 : index
    %c0_1 = arith.constant 0 : index
    %c0_2 = arith.constant 0 : index
    %3 = vector.load %arg3[%c0, %c0_1, %c0_2] : memref<4x8x256xf32, #tpu.memory_space<vmem>>, vector<4x8x256xf32>
    %c0_3 = arith.constant 0 : index
    %c0_4 = arith.constant 0 : index
    %c0_5 = arith.constant 0 : index
    %4 = vector.load %arg2[%c0_3, %c0_4, %c0_5] : memref<3x8x256xf32, #tpu.memory_space<vmem>>, vector<1x8x256xf32>
    %5 = vector.shape_cast %4 : vector<1x8x256xf32> to vector<8x256xf32>
    %c1 = arith.constant 1 : index
    %c0_6 = arith.constant 0 : index
    %c0_7 = arith.constant 0 : index
    %6 = vector.load %arg2[%c1, %c0_6, %c0_7] : memref<3x8x256xf32, #tpu.memory_space<vmem>>, vector<1x8x256xf32>
    %7 = vector.shape_cast %6 : vector<1x8x256xf32> to vector<8x256xf32>
    %c2 = arith.constant 2 : index
    %c0_8 = arith.constant 0 : index
    %c0_9 = arith.constant 0 : index
    %8 = vector.load %arg2[%c2, %c0_8, %c0_9] : memref<3x8x256xf32, #tpu.memory_space<vmem>>, vector<1x8x256xf32>
    %9 = vector.shape_cast %8 : vector<1x8x256xf32> to vector<8x256xf32>
    %c7_i32 = arith.constant 7 : i32
    %10 = tpu.dynamic_rotate %3 by %c7_i32 dim 1 : vector<4x8x256xf32>, i32 -> vector<4x8x256xf32>
    %11 = arith.subf %10, %3 : vector<4x8x256xf32>
    %12 = vector.shape_cast %5 : vector<8x256xf32> to vector<1x8x256xf32>
    %13 = vector.broadcast %12 : vector<1x8x256xf32> to vector<4x8x256xf32>
    %14 = arith.mulf %11, %13 : vector<4x8x256xf32>
    %c240_i32 = arith.constant 240 : i32
    %15 = tpu.dynamic_rotate %3 by %c240_i32 dim 2 : vector<4x8x256xf32>, i32 -> vector<4x8x256xf32>
    %16 = arith.subf %15, %3 : vector<4x8x256xf32>
    %17 = vector.shape_cast %7 : vector<8x256xf32> to vector<1x8x256xf32>
    %18 = vector.broadcast %17 : vector<1x8x256xf32> to vector<4x8x256xf32>
    %19 = arith.mulf %16, %18 : vector<4x8x256xf32>
    %c255_i32 = arith.constant 255 : i32
    %20 = tpu.dynamic_rotate %3 by %c255_i32 dim 2 : vector<4x8x256xf32>, i32 -> vector<4x8x256xf32>
    %21 = arith.subf %20, %3 : vector<4x8x256xf32>
    %22 = vector.shape_cast %9 : vector<8x256xf32> to vector<1x8x256xf32>
    %23 = vector.broadcast %22 : vector<1x8x256xf32> to vector<4x8x256xf32>
    %24 = arith.mulf %21, %23 : vector<4x8x256xf32>
    %c0_10 = arith.constant 0 : index
    %c0_11 = arith.constant 0 : index
    %c0_12 = arith.constant 0 : index
    %25 = vector.load %arg4[%c0_10, %c0_11, %c0_12] : memref<1x8x256xf32, #tpu.memory_space<vmem>>, vector<1x8x256xf32>
    %26 = arith.mulf %14, %14 : vector<4x8x256xf32>
    %cst = arith.constant dense<0.000000e+00> : vector<8x256xf32>
    %27 = vector.multi_reduction <add>, %26, %cst [0] : vector<4x8x256xf32> to vector<8x256xf32>
    %28 = vector.shape_cast %27 : vector<8x256xf32> to vector<1x8x256xf32>
    %29 = arith.addf %25, %28 : vector<1x8x256xf32>
    %c0_13 = arith.constant 0 : index
    %c0_14 = arith.constant 0 : index
    %c0_15 = arith.constant 0 : index
    %30 = vector.load %arg4[%c0_13, %c0_14, %c0_15] : memref<1x8x256xf32, #tpu.memory_space<vmem>>, vector<1x8x256xf32>
    tpu.vector_store %arg4[%c0_13, %c0_14, %c0_15], %29 {strides = array<i32>} : memref<1x8x256xf32, #tpu.memory_space<vmem>>, vector<1x8x256xf32>,
    %c0_16 = arith.constant 0 : index
    %c0_17 = arith.constant 0 : index
    %c0_18 = arith.constant 0 : index
    %31 = vector.load %arg5[%c0_16, %c0_17, %c0_18] : memref<1x8x256xf32, #tpu.memory_space<vmem>>, vector<1x8x256xf32>
    %32 = arith.mulf %19, %19 : vector<4x8x256xf32>
    %cst_19 = arith.constant dense<0.000000e+00> : vector<8x256xf32>
    %33 = vector.multi_reduction <add>, %32, %cst_19 [0] : vector<4x8x256xf32> to vector<8x256xf32>
    %34 = vector.shape_cast %33 : vector<8x256xf32> to vector<1x8x256xf32>
    %35 = arith.addf %31, %34 : vector<1x8x256xf32>
    %c0_20 = arith.constant 0 : index
    %c0_21 = arith.constant 0 : index
    %c0_22 = arith.constant 0 : index
    %36 = vector.load %arg5[%c0_20, %c0_21, %c0_22] : memref<1x8x256xf32, #tpu.memory_space<vmem>>, vector<1x8x256xf32>
    tpu.vector_store %arg5[%c0_20, %c0_21, %c0_22], %35 {strides = array<i32>} : memref<1x8x256xf32, #tpu.memory_space<vmem>>, vector<1x8x256xf32>,
    %c0_23 = arith.constant 0 : index
    %c0_24 = arith.constant 0 : index
    %c0_25 = arith.constant 0 : index
    %37 = vector.load %arg6[%c0_23, %c0_24, %c0_25] : memref<1x8x256xf32, #tpu.memory_space<vmem>>, vector<1x8x256xf32>
    %38 = arith.mulf %24, %24 : vector<4x8x256xf32>
    %cst_26 = arith.constant dense<0.000000e+00> : vector<8x256xf32>
    %39 = vector.multi_reduction <add>, %38, %cst_26 [0] : vector<4x8x256xf32> to vector<8x256xf32>
    %40 = vector.shape_cast %39 : vector<8x256xf32> to vector<1x8x256xf32>
    %41 = arith.addf %37, %40 : vector<1x8x256xf32>
    %c0_27 = arith.constant 0 : index
    %c0_28 = arith.constant 0 : index
    %c0_29 = arith.constant 0 : index
    %42 = vector.load %arg6[%c0_27, %c0_28, %c0_29] : memref<1x8x256xf32, #tpu.memory_space<vmem>>, vector<1x8x256xf32>
    tpu.vector_store %arg6[%c0_27, %c0_28, %c0_29], %41 {strides = array<i32>} : memref<1x8x256xf32, #tpu.memory_space<vmem>>, vector<1x8x256xf32>,
    return
  }
  func.func @transform_0(%arg0: i32, %arg1: i32) -> (i32, i32, i32) {
    %c0_i32 = arith.constant 0 : i32
    %c0_i32_0 = arith.constant 0 : i32
    %c0_i32_1 = arith.constant 0 : i32
    %c0_i32_2 = arith.constant 0 : i32
    return %c0_i32, %c0_i32_0, %c0_i32_1 : i32, i32, i32
  }
  func.func @transform_1(%arg0: i32, %arg1: i32) -> (i32, i32, i32) {
    %c1_i32 = arith.constant 1 : i32
    %0 = arith.muli %arg0, %c1_i32 : i32
    %1 = arith.addi %0, %arg1 : i32
    %c0_i32 = arith.constant 0 : i32
    %c0_i32_0 = arith.constant 0 : i32
    %c0_i32_1 = arith.constant 0 : i32
    return %1, %c0_i32, %c0_i32_0 : i32, i32, i32
  }
  func.func @transform_2(%arg0: i32, %arg1: i32) -> (i32, i32, i32) {
    %c0_i32 = arith.constant 0 : i32
    %c0_i32_0 = arith.constant 0 : i32
    %c0_i32_1 = arith.constant 0 : i32
    return %arg0, %c0_i32, %c0_i32_0 : i32, i32, i32
  }
  func.func @transform_3(%arg0: i32, %arg1: i32) -> (i32, i32, i32) {
    %c0_i32 = arith.constant 0 : i32
    %c0_i32_0 = arith.constant 0 : i32
    %c0_i32_1 = arith.constant 0 : i32
    return %arg0, %c0_i32, %c0_i32_0 : i32, i32, i32
  }
  func.func @transform_4(%arg0: i32, %arg1: i32) -> (i32, i32, i32) {
    %c0_i32 = arith.constant 0 : i32
    %c0_i32_0 = arith.constant 0 : i32
    %c0_i32_1 = arith.constant 0 : i32
    return %arg0, %c0_i32, %c0_i32_0 : i32, i32, i32
  }
}

</mosaic_0001>

<llo_original>
// kernel: laplacian_loss.1
$region0: #{laplacian_loss.1}
  #allocation0 [shape = 'u32[]', space=smem, size = 0x4, offset = 0x4, fixed_abs, tag = 'smem constant byte address 0x4 - core index']
  #allocation1 [shape = 'u32[72,128]{1,0:T(1,128)}', space=vmem, size = 0x9000, scoped, tag = 'internal scratch']
  %s0 = inlined_call_operand.vmem [shape: f32[3,8,256], index: 0, kind: input, shape index: {}]
  %s1 = inlined_call_operand.vmem [shape: f32[8,8,256], index: 1, kind: input, shape index: {}]
  %s2 = inlined_call_operand.vmem [shape: f32[2,8,256], index: 2, kind: output, shape index: {0}]
  %s3 = inlined_call_operand.vmem [shape: f32[2,8,256], index: 3, kind: output, shape index: {1}]
  %s4 = inlined_call_operand.vmem [shape: f32[2,8,256], index: 4, kind: output, shape index: {2}]
  %5 = xla_tuple %s2, %s3, %s4
  %s6 = sld [smem:[#allocation0]]
  $region61: #{laplacian_loss.1} parent=0
    _
  %s8 = ssub.s32 1, %s6
  %s9 = scalar_select 0, %s8, %s6
  loop: start=0, step=1, limit=4
  $region2: #{laplacian_loss.1} parent=0 // loop_pre_header
    _
  $region3: #{laplacian_loss.1} parent=0 // loop_header
    %s11 = sphi 0, %s15
    %p12 = scmp.ge.s32.totalorder %s11, 4
    %s18 = sphi 0, %s30
    %s19 = sphi 0, %s26
    %s20 = sphi 0, %s18
    %s21 = sphi 0, %s19
    %s22 = sphi 0, %s20
    %s23 = sphi 0, %s21
    %s31 = sphi 0, %s31
    %s33 = sphi 0, %s31
    %s34 = sphi 0, %s33
    %s48 = sphi 0, %s34
    %s56 = sphi 0, %s58
    %s59 = sphi 0, %s56
    %s60 = sphi 0, %s59
    %s76 = sphi 0, %s60
    %s82 = sphi 0, %s84
    %s85 = sphi 0, %s82
    %s86 = sphi 0, %s85
    %s102 = sphi 0, %s86
    %s108 = sphi 0, %s110
    %s111 = sphi 0, %s108
    %s112 = sphi 0, %s111
    %s128 = sphi 0, %s112
    %s134 = sphi 0, %s136
    %s137 = sphi 0, %s134
    %s138 = sphi 0, %s137
    %s154 = sphi 0, %s138
  $region4: #{laplacian_loss.1} parent=0 // loop_header_branch
    %14 = sbr.rel (%p12) target = $region8
  $region5: #{laplacian_loss.1} parent=0 // loop_body
    %s16 = ssub.s32 %s11, 1
    %s17 = ssub.s32 %s11, 2
    %s24 = sadd.s32 1, %s19
    %p25 = scmp.ge.s32.totalorder %s24, 1
    %s26 = scalar_select %p25, 0, %s24
    %s27 = sadd.s32 1, %s18
    %s28 = scalar_select %p25, %s27, %s18
    %p29 = scmp.ge.s32.totalorder %s28, 2
    %s30 = scalar_select %p29, 0, %s28
    %s32 = sadd.s32 %s31, 1
    %p35 = scmp.eq.s32.totalorder %s11, 1
    %p36 = scmp.ne.s32.totalorder %s31, %s33
    %p37 = scmp.eq.s32.totalorder %s11, 0
    %p38 = por %p36, %p37
    %p39 = scmp.ne.s32.totalorder %s31, %s33
    %p40 = scmp.eq.s32.totalorder %s16, 1
    %p41 = por %p39, %p40
    %p42 = scmp.ne.s32.totalorder %s33, %s34
    %p43 = scmp.eq.s32.totalorder %s16, 0
    %p44 = por %p42, %p43
    %p45 = scmp.ne.s32.totalorder %s33, %s34
    %p46 = scmp.eq.s32.totalorder %s17, 1
    %p47 = por %p45, %p46
    %p49 = scmp.ne.s32.totalorder %s34, %s48
    %p50 = scmp.eq.s32.totalorder %s17, 0
    %p51 = por %p49, %p50
    %s52 = sadd.s32 %s18, %s19
    %s53 = sadd.s32 %s30, %s26
    %s54 = ssub.s32 %s52, %s53
    %p55 = scmp.eq.s32.totalorder %s54, 0
    %s57 = sadd.s32 %s56, 1
    %s58 = scalar_select %p55, %s56, %s57
    %p61 = pneg %p55
    %p62 = scmp.eq.s32.totalorder %s11, 1
    %p63 = por %p61, %p62
    %p64 = scmp.ne.s32.totalorder %s56, %s59
    %p65 = scmp.eq.s32.totalorder %s11, 0
    %p66 = por %p64, %p65
    %p67 = scmp.ne.s32.totalorder %s56, %s59
    %p68 = scmp.eq.s32.totalorder %s16, 1
    %p69 = por %p67, %p68
    %p70 = scmp.ne.s32.totalorder %s59, %s60
    %p71 = scmp.eq.s32.totalorder %s16, 0
    %p72 = por %p70, %p71
    %p73 = scmp.ne.s32.totalorder %s59, %s60
    %p74 = scmp.eq.s32.totalorder %s17, 1
    %p75 = por %p73, %p74
    %p77 = scmp.ne.s32.totalorder %s60, %s76
    %p78 = scmp.eq.s32.totalorder %s17, 0
    %p79 = por %p77, %p78
    %s80 = ssub.s32 %s18, %s30
    %p81 = scmp.eq.s32.totalorder %s80, 0
    %s83 = sadd.s32 %s82, 1
    %s84 = scalar_select %p81, %s82, %s83
    %p87 = pneg %p81
    %p88 = scmp.eq.s32.totalorder %s11, 1
    %p89 = por %p87, %p88
    %p90 = scmp.ne.s32.totalorder %s82, %s85
    %p91 = scmp.eq.s32.totalorder %s11, 0
    %p92 = por %p90, %p91
    %p93 = scmp.ne.s32.totalorder %s82, %s85
    %p94 = scmp.eq.s32.totalorder %s16, 1
    %p95 = por %p93, %p94
    %p96 = scmp.ne.s32.totalorder %s85, %s86
    %p97 = scmp.eq.s32.totalorder %s16, 0
    %p98 = por %p96, %p97
    %p99 = scmp.ne.s32.totalorder %s85, %s86
    %p100 = scmp.eq.s32.totalorder %s17, 1
    %p101 = por %p99, %p100
    %p103 = scmp.ne.s32.totalorder %s86, %s102
    %p104 = scmp.eq.s32.totalorder %s17, 0
    %p105 = por %p103, %p104
    %s106 = ssub.s32 %s18, %s30
    %p107 = scmp.eq.s32.totalorder %s106, 0
    %s109 = sadd.s32 %s108, 1
    %s110 = scalar_select %p107, %s108, %s109
    %p113 = pneg %p107
    %p114 = scmp.eq.s32.totalorder %s11, 1
    %p115 = por %p113, %p114
    %p116 = scmp.ne.s32.totalorder %s108, %s111
    %p117 = scmp.eq.s32.totalorder %s11, 0
    %p118 = por %p116, %p117
    %p119 = scmp.ne.s32.totalorder %s108, %s111
    %p120 = scmp.eq.s32.totalorder %s16, 1
    %p121 = por %p119, %p120
    %p122 = scmp.ne.s32.totalorder %s111, %s112
    %p123 = scmp.eq.s32.totalorder %s16, 0
    %p124 = por %p122, %p123
    %p125 = scmp.ne.s32.totalorder %s111, %s112
    %p126 = scmp.eq.s32.totalorder %s17, 1
    %p127 = por %p125, %p126
    %p129 = scmp.ne.s32.totalorder %s112, %s128
    %p130 = scmp.eq.s32.totalorder %s17, 0
    %p131 = por %p129, %p130
    %s132 = ssub.s32 %s18, %s30
    %p133 = scmp.eq.s32.totalorder %s132, 0
    %s135 = sadd.s32 %s134, 1
    %s136 = scalar_select %p133, %s134, %s135
    %p139 = pneg %p133
    %p140 = scmp.eq.s32.totalorder %s11, 1
    %p141 = por %p139, %p140
    %p142 = scmp.ne.s32.totalorder %s134, %s137
    %p143 = scmp.eq.s32.totalorder %s11, 0
    %p144 = por %p142, %p143
    %p145 = scmp.ne.s32.totalorder %s134, %s137
    %p146 = scmp.eq.s32.totalorder %s16, 1
    %p147 = por %p145, %p146
    %p148 = scmp.ne.s32.totalorder %s137, %s138
    %p149 = scmp.eq.s32.totalorder %s16, 0
    %p150 = por %p148, %p149
    %p151 = scmp.ne.s32.totalorder %s137, %s138
    %p152 = scmp.eq.s32.totalorder %s17, 1
    %p153 = por %p151, %p152
    %p155 = scmp.ne.s32.totalorder %s138, %s154
    %p156 = scmp.eq.s32.totalorder %s17, 0
    %p157 = por %p155, %p156
    %p158 = scmp.le.s32.totalorder 1, %s11
    %p159 = scmp.lt.s32.totalorder %s11, 3
    %p160 = pnand %p158, %p159
    %p161 = pneg %p160
    // Predicated region
    $region9: #{laplacian_loss.1} parent=5 // pred_check
      _
    $region10: #{laplacian_loss.1} parent=5 // pred_check_branch
      %163 = sbr.rel (%p160) target = $region12
    $region11: #{laplacian_loss.1} parent=5 // pred_region
      %s164 = ssub.s32 %s11, 1
      // Predicated region
      $region13: #{laplacian_loss.1} parent=11 // pred_check
        %p165 = pneg %p44
      $region14: #{laplacian_loss.1} parent=11 // pred_check_branch
        %167 = sbr.rel (%p165) target = $region16
      $region15: #{laplacian_loss.1} parent=11 // pred_region
        _
      $region16: #{laplacian_loss.1} parent=11 // pred_fallthru
        _
    $region12: #{laplacian_loss.1} parent=5 // pred_fallthru
      _
    %p168 = scmp.lt.s32.totalorder %s11, 2
    // Predicated region
    $region17: #{laplacian_loss.1} parent=5 // pred_check
      %p169 = pneg %p168
    $region18: #{laplacian_loss.1} parent=5 // pred_check_branch
      %171 = sbr.rel (%p169) target = $region20
    $region19: #{laplacian_loss.1} parent=5 // pred_region
      // Predicated region
      $region21: #{laplacian_loss.1} parent=19 // pred_check
        %p172 = pneg %p66
      $region22: #{laplacian_loss.1} parent=19 // pred_check_branch
        %174 = sbr.rel (%p172) target = $region24
      $region23: #{laplacian_loss.1} parent=19 // pred_region
        %s175 = sadd.s32 %s18, %s19
        %s176 = smul.u32 4, %s175
        %p177 = scmp.lt.s32.totalorder %s176, 7
        %s178 = scalar_select %p177, %s176, 7
        %s179 = smul.addr %s178, 2
        %s180 = smul.addr %s179, 8
        %s181 = scalar_lea.vmem %s1, %s180
        %s182 = sadd.s32 %s18, %s19
        %s183 = smul.u32 4, %s182
      $region24: #{laplacian_loss.1} parent=19 // pred_fallthru
        _
    $region20: #{laplacian_loss.1} parent=5 // pred_fallthru
      _
    %p184 = scmp.le.s32.totalorder 1, %s11
    %p185 = scmp.lt.s32.totalorder %s11, 3
    %p186 = pnand %p184, %p185
    %p187 = pneg %p186
    // Predicated region
    $region25: #{laplacian_loss.1} parent=5 // pred_check
      _
    $region26: #{laplacian_loss.1} parent=5 // pred_check_branch
      %189 = sbr.rel (%p186) target = $region28
    $region27: #{laplacian_loss.1} parent=5 // pred_region
      %s190 = ssub.s32 %s11, 1
      %p191 = pneg %p44
      %p192 = pneg %p41
      %s193 = sadd.s32 %s20, %s21
      %s194 = smul.u32 4, %s193
      %p195 = scmp.lt.s32.totalorder %s194, 7
      %s196 = scalar_select %p195, %s194, 7
      %s197 = smul.addr %s196, 2
      %s198 = smul.addr %s197, 8
      %s199 = scalar_lea.vmem %s1, %s198
      %p200 = pneg %p72
      %p201 = pneg %p69
      %p202 = pneg %p98
      %p203 = pneg %p95
      %p204 = scmp.lt.s32.totalorder %s20, 1
      %s205 = scalar_select %p204, %s20, 1
      %s206 = smul.addr %s205, 2
      %s207 = smul.addr %s206, 8
      %s208 = scalar_lea.vmem %s2, %s207
      %p209 = pneg %p124
      %p210 = pneg %p121
      %p211 = scmp.lt.s32.totalorder %s20, 1
      %s212 = scalar_select %p211, %s20, 1
      %s213 = smul.addr %s212, 2
      %s214 = smul.addr %s213, 8
      %s215 = scalar_lea.vmem %s3, %s214
      %p216 = pneg %p150
      %p217 = pneg %p147
      %p218 = scmp.lt.s32.totalorder %s20, 1
      %s219 = scalar_select %p218, %s20, 1
      %s220 = smul.addr %s219, 2
      %s221 = smul.addr %s220, 8
      %s222 = scalar_lea.vmem %s4, %s221
      %s223 = sadd.s32 %s20, %s21
      %s224 = smul.u32 4, %s223
      %p225 = scmp.lt.s32.totalorder %s224, 7
      %s226 = scalar_select %p225, %s224, 7
      %s227 = smul.addr %s226, 2
      %s228 = smul.addr %s227, 8
      %s229 = scalar_lea.vmem %s1, %s228
      %s230 = sadd.s32 %s20, %s21
      %s231 = smul.u32 4, %s230
      %p232 = scmp.lt.s32.totalorder %s20, 1
      %s233 = scalar_select %p232, %s20, 1
      %s234 = smul.addr %s233, 2
      %s235 = smul.addr %s234, 8
      %s236 = scalar_lea.vmem %s2, %s235
      %p237 = scmp.lt.s32.totalorder %s20, 1
      %s238 = scalar_select %p237, %s20, 1
      %s239 = smul.addr %s238, 2
      %s240 = smul.addr %s239, 8
      %s241 = scalar_lea.vmem %s3, %s240
      %p242 = scmp.lt.s32.totalorder %s20, 1
      %s243 = scalar_select %p242, %s20, 1
      %s244 = smul.addr %s243, 2
      %s245 = smul.addr %s244, 8
      %s246 = scalar_lea.vmem %s4, %s245
      %p247 = scmp.eq.s32.totalorder %s21, 0
      // Predicated region
      $region29: #{laplacian_loss.1} parent=27 // pred_check
        %p248 = pneg %p247
      $region30: #{laplacian_loss.1} parent=27 // pred_check_branch
        %250 = sbr.rel (%p248) target = $region32
      $region31: #{laplacian_loss.1} parent=27 // pred_region
        %251 = vst [vmem:[%s236] sm:$0xff] 0.0
        %252 = vst [vmem:[%s236 + $0x8] sm:$0xff] 0.0
        %253 = vst [vmem:[%s241] sm:$0xff] 0.0
        %254 = vst [vmem:[%s241 + $0x8] sm:$0xff] 0.0
        %255 = vst [vmem:[%s246] sm:$0xff] 0.0
        %256 = vst [vmem:[%s246 + $0x8] sm:$0xff] 0.0
      $region32: #{laplacian_loss.1} parent=27 // pred_fallthru
        _
      %v257 = vld [vmem:[%s229] sm:$0xff]
      %v258 = vld [vmem:[%s229 + $0x8] sm:$0xff]
      %v259 = vld [vmem:[%s229 + $0x10] sm:$0xff]
      %v260 = vld [vmem:[%s229 + $0x18] sm:$0xff]
      %v261 = vld [vmem:[%s229 + $0x20] sm:$0xff]
      %v262 = vld [vmem:[%s229 + $0x28] sm:$0xff]
      %v263 = vld [vmem:[%s229 + $0x30] sm:$0xff]
      %v264 = vld [vmem:[%s229 + $0x38] sm:$0xff]
      %v265 = vld [vmem:[%s0] sm:$0xff]
      %v266 = vld [vmem:[%s0 + $0x8] sm:$0xff]
      %s267 = scalar_lea.vmem %s0, 16
      %v268 = vld [vmem:[%s267] sm:$0xff]
      %v269 = vld [vmem:[%s267 + $0x8] sm:$0xff]
      %s270 = scalar_lea.vmem %s0, 32
      %v271 = vld [vmem:[%s270] sm:$0xff]
      %v272 = vld [vmem:[%s270 + $0x8] sm:$0xff]
      %v273 = vrot.slane %v257, 1
      %v274 = vrot.slane %v258, 1
      %v275 = vrot.slane %v259, 1
      %v276 = vrot.slane %v260, 1
      %v277 = vrot.slane %v261, 1
      %v278 = vrot.slane %v262, 1
      %v279 = vrot.slane %v263, 1
      %v280 = vrot.slane %v264, 1
      %v281 = vsub.f32 %v273, %v257
      %v282 = vsub.f32 %v274, %v258
      %v283 = vsub.f32 %v275, %v259
      %v284 = vsub.f32 %v276, %v260
      %v285 = vsub.f32 %v277, %v261
      %v286 = vsub.f32 %v278, %v262
      %v287 = vsub.f32 %v279, %v263
      %v288 = vsub.f32 %v280, %v264
      %v289 = vmul.f32 %v281, %v265
      %v290 = vmul.f32 %v282, %v266
      %v291 = vmul.f32 %v283, %v265
      %v292 = vmul.f32 %v284, %v266
      %v293 = vmul.f32 %v285, %v265
      %v294 = vmul.f32 %v286, %v266
      %v295 = vmul.f32 %v287, %v265
      %v296 = vmul.f32 %v288, %v266
      %297 = vrot.lane.b32.xlu0 %v257, 112
      %v298 = vpop.permute.xlu0 %297
      %299 = vrot.lane.b32.xlu0 %v259, 112
      %v300 = vpop.permute.xlu0 %299
      %301 = vrot.lane.b32.xlu0 %v261, 112
      %v302 = vpop.permute.xlu0 %301
      %303 = vrot.lane.b32.xlu0 %v263, 112
      %v304 = vpop.permute.xlu0 %303
      %305 = vrot.lane.b32.xlu0 %v258, 112
      %v306 = vpop.permute.xlu0 %305
      %307 = vrot.lane.b32.xlu0 %v260, 112
      %v308 = vpop.permute.xlu0 %307
      %309 = vrot.lane.b32.xlu0 %v262, 112
      %v310 = vpop.permute.xlu0 %309
      %311 = vrot.lane.b32.xlu0 %v264, 112
      %v312 = vpop.permute.xlu0 %311
      %v313 = vlaneseq
      %v314 = vand.u32 %v313, 127
      %vm315 = vcmp.lt.s32.totalorder %v314, 112
      %v316 = vsel %vm315, %v298, %v306
      %v317 = vsel %vm315, %v300, %v308
      %v318 = vsel %vm315, %v302, %v310
      %v319 = vsel %vm315, %v304, %v312
      %v320 = vsel %vm315, %v306, %v298
      %v321 = vsel %vm315, %v308, %v300
      %v322 = vsel %vm315, %v310, %v302
      %v323 = vsel %vm315, %v312, %v304
      %v324 = vsub.f32 %v316, %v257
      %v325 = vsub.f32 %v320, %v258
      %v326 = vsub.f32 %v317, %v259
      %v327 = vsub.f32 %v321, %v260
      %v328 = vsub.f32 %v318, %v261
      %v329 = vsub.f32 %v322, %v262
      %v330 = vsub.f32 %v319, %v263
      %v331 = vsub.f32 %v323, %v264
      %v332 = vmul.f32 %v324, %v268
      %v333 = vmul.f32 %v325, %v269
      %v334 = vmul.f32 %v326, %v268
      %v335 = vmul.f32 %v327, %v269
      %v336 = vmul.f32 %v328, %v268
      %v337 = vmul.f32 %v329, %v269
      %v338 = vmul.f32 %v330, %v268
      %v339 = vmul.f32 %v331, %v269
      %340 = vrot.lane.b32.xlu0 %v257, 127
      %v341 = vpop.permute.xlu0 %340
      %342 = vrot.lane.b32.xlu0 %v259, 127
      %v343 = vpop.permute.xlu0 %342
      %344 = vrot.lane.b32.xlu0 %v261, 127
      %v345 = vpop.permute.xlu0 %344
      %346 = vrot.lane.b32.xlu0 %v263, 127
      %v347 = vpop.permute.xlu0 %346
      %348 = vrot.lane.b32.xlu0 %v258, 127
      %v349 = vpop.permute.xlu0 %348
      %350 = vrot.lane.b32.xlu0 %v260, 127
      %v351 = vpop.permute.xlu0 %350
      %352 = vrot.lane.b32.xlu0 %v262, 127
      %v353 = vpop.permute.xlu0 %352
      %354 = vrot.lane.b32.xlu0 %v264, 127
      %v355 = vpop.permute.xlu0 %354
      %vm356 = vcmp.lt.s32.totalorder %v314, 127
      %v357 = vsel %vm356, %v341, %v349
      %v358 = vsel %vm356, %v343, %v351
      %v359 = vsel %vm356, %v345, %v353
      %v360 = vsel %vm356, %v347, %v355
      %v361 = vsel %vm356, %v349, %v341
      %v362 = vsel %vm356, %v351, %v343
      %v363 = vsel %vm356, %v353, %v345
      %v364 = vsel %vm356, %v355, %v347
      %v365 = vsub.f32 %v357, %v257
      %v366 = vsub.f32 %v361, %v258
      %v367 = vsub.f32 %v358, %v259
      %v368 = vsub.f32 %v362, %v260
      %v369 = vsub.f32 %v359, %v261
      %v370 = vsub.f32 %v363, %v262
      %v371 = vsub.f32 %v360, %v263
      %v372 = vsub.f32 %v364, %v264
      %v373 = vmul.f32 %v365, %v271
      %v374 = vmul.f32 %v366, %v272
      %v375 = vmul.f32 %v367, %v271
      %v376 = vmul.f32 %v368, %v272
      %v377 = vmul.f32 %v369, %v271
      %v378 = vmul.f32 %v370, %v272
      %v379 = vmul.f32 %v371, %v271
      %v380 = vmul.f32 %v372, %v272
      %v381 = vld [vmem:[%s236] sm:$0xff]
      %v382 = vld [vmem:[%s236 + $0x8] sm:$0xff]
      %v383 = vmul.f32 %v289, %v289
      %v384 = vmul.f32 %v290, %v290
      %v385 = vmul.f32 %v291, %v291
      %v386 = vmul.f32 %v292, %v292
      %v387 = vmul.f32 %v293, %v293
      %v388 = vmul.f32 %v294, %v294
      %v389 = vmul.f32 %v295, %v295
      %v390 = vmul.f32 %v296, %v296
      %v391 = vadd.f32 %v383, %v385
      %v392 = vadd.f32 %v391, %v387
      %v393 = vadd.f32 %v392, %v389
      %v394 = vadd.f32 %v384, %v386
      %v395 = vadd.f32 %v394, %v388
      %v396 = vadd.f32 %v395, %v390
      %v397 = vadd.f32 %v381, %v393
      %v398 = vadd.f32 %v382, %v396
      %399 = vst [vmem:[%s236] sm:$0xff] %v397
      %400 = vst [vmem:[%s236 + $0x8] sm:$0xff] %v398
      %v401 = vld [vmem:[%s241] sm:$0xff]
      %v402 = vld [vmem:[%s241 + $0x8] sm:$0xff]
      %v403 = vmul.f32 %v332, %v332
      %v404 = vmul.f32 %v333, %v333
      %v405 = vmul.f32 %v334, %v334
      %v406 = vmul.f32 %v335, %v335
      %v407 = vmul.f32 %v336, %v336
      %v408 = vmul.f32 %v337, %v337
      %v409 = vmul.f32 %v338, %v338
      %v410 = vmul.f32 %v339, %v339
      %v411 = vadd.f32 %v403, %v405
      %v412 = vadd.f32 %v411, %v407
      %v413 = vadd.f32 %v412, %v409
      %v414 = vadd.f32 %v404, %v406
      %v415 = vadd.f32 %v414, %v408
      %v416 = vadd.f32 %v415, %v410
      %v417 = vadd.f32 %v401, %v413
      %v418 = vadd.f32 %v402, %v416
      %419 = vst [vmem:[%s241] sm:$0xff] %v417
      %420 = vst [vmem:[%s241 + $0x8] sm:$0xff] %v418
      %v421 = vld [vmem:[%s246] sm:$0xff]
      %v422 = vld [vmem:[%s246 + $0x8] sm:$0xff]
      %v423 = vmul.f32 %v373, %v373
      %v424 = vmul.f32 %v374, %v374
      %v425 = vmul.f32 %v375, %v375
      %v426 = vmul.f32 %v376, %v376
      %v427 = vmul.f32 %v377, %v377
      %v428 = vmul.f32 %v378, %v378
      %v429 = vmul.f32 %v379, %v379
      %v430 = vmul.f32 %v380, %v380
      %v431 = vadd.f32 %v423, %v425
      %v432 = vadd.f32 %v431, %v427
      %v433 = vadd.f32 %v432, %v429
      %v434 = vadd.f32 %v424, %v426
      %v435 = vadd.f32 %v434, %v428
      %v436 = vadd.f32 %v435, %v430
      %v437 = vadd.f32 %v421, %v433
      %v438 = vadd.f32 %v422, %v436
      %439 = vst [vmem:[%s246] sm:$0xff] %v437
      %440 = vst [vmem:[%s246 + $0x8] sm:$0xff] %v438
      %p441 = scmp.lt.s32.totalorder %s20, 1
      %s442 = scalar_select %p441, %s20, 1
      %s443 = smul.addr %s442, 2
      %s444 = smul.addr %s443, 8
      %s445 = scalar_lea.vmem %s2, %s444
      %p446 = scmp.lt.s32.totalorder %s20, 1
      %s447 = scalar_select %p446, %s20, 1
      %s448 = smul.addr %s447, 2
      %s449 = smul.addr %s448, 8
      %s450 = scalar_lea.vmem %s3, %s449
      %p451 = scmp.lt.s32.totalorder %s20, 1
      %s452 = scalar_select %p451, %s20, 1
      %s453 = smul.addr %s452, 2
      %s454 = smul.addr %s453, 8
      %s455 = scalar_lea.vmem %s4, %s454
      // Predicated region
      $region33: #{laplacian_loss.1} parent=27 // pred_check
        %p456 = pneg %p95
      $region34: #{laplacian_loss.1} parent=27 // pred_check_branch
        %458 = sbr.rel (%p456) target = $region36
      $region35: #{laplacian_loss.1} parent=27 // pred_region
        _
      $region36: #{laplacian_loss.1} parent=27 // pred_fallthru
        _
      // Predicated region
      $region37: #{laplacian_loss.1} parent=27 // pred_check
        %p459 = pneg %p121
      $region38: #{laplacian_loss.1} parent=27 // pred_check_branch
        %461 = sbr.rel (%p459) target = $region40
      $region39: #{laplacian_loss.1} parent=27 // pred_region
        _
      $region40: #{laplacian_loss.1} parent=27 // pred_fallthru
        _
      // Predicated region
      $region41: #{laplacian_loss.1} parent=27 // pred_check
        %p462 = pneg %p147
      $region42: #{laplacian_loss.1} parent=27 // pred_check_branch
        %464 = sbr.rel (%p462) target = $region44
      $region43: #{laplacian_loss.1} parent=27 // pred_region
        _
      $region44: #{laplacian_loss.1} parent=27 // pred_fallthru
        _
    $region28: #{laplacian_loss.1} parent=5 // pred_fallthru
      _
    %p465 = scmp.le.s32.totalorder 2, %s11
    // Predicated region
    $region45: #{laplacian_loss.1} parent=5 // pred_check
      %p466 = pneg %p465
    $region46: #{laplacian_loss.1} parent=5 // pred_check_branch
      %468 = sbr.rel (%p466) target = $region48
    $region47: #{laplacian_loss.1} parent=5 // pred_region
      %s469 = ssub.s32 %s11, 2
      // Predicated region
      $region49: #{laplacian_loss.1} parent=47 // pred_check
        %p470 = pneg %p101
      $region50: #{laplacian_loss.1} parent=47 // pred_check_branch
        %472 = sbr.rel (%p470) target = $region52
      $region51: #{laplacian_loss.1} parent=47 // pred_region
        %p473 = scmp.lt.s32.totalorder %s22, 1
        %s474 = scalar_select %p473, %s22, 1
        %s475 = smul.addr %s474, 2
        %s476 = smul.addr %s475, 8
        %s477 = scalar_lea.vmem %s2, %s476
      $region52: #{laplacian_loss.1} parent=47 // pred_fallthru
        _
      // Predicated region
      $region53: #{laplacian_loss.1} parent=47 // pred_check
        %p478 = pneg %p127
      $region54: #{laplacian_loss.1} parent=47 // pred_check_branch
        %480 = sbr.rel (%p478) target = $region56
      $region55: #{laplacian_loss.1} parent=47 // pred_region
        %p481 = scmp.lt.s32.totalorder %s22, 1
        %s482 = scalar_select %p481, %s22, 1
        %s483 = smul.addr %s482, 2
        %s484 = smul.addr %s483, 8
        %s485 = scalar_lea.vmem %s3, %s484
      $region56: #{laplacian_loss.1} parent=47 // pred_fallthru
        _
      // Predicated region
      $region57: #{laplacian_loss.1} parent=47 // pred_check
        %p486 = pneg %p153
      $region58: #{laplacian_loss.1} parent=47 // pred_check_branch
        %488 = sbr.rel (%p486) target = $region60
      $region59: #{laplacian_loss.1} parent=47 // pred_region
        %p489 = scmp.lt.s32.totalorder %s22, 1
        %s490 = scalar_select %p489, %s22, 1
        %s491 = smul.addr %s490, 2
        %s492 = smul.addr %s491, 8
        %s493 = scalar_lea.vmem %s4, %s492
      $region60: #{laplacian_loss.1} parent=47 // pred_fallthru
        _
    $region48: #{laplacian_loss.1} parent=5 // pred_fallthru
      _
  $region6: #{laplacian_loss.1} parent=0 // loop_footer
    %s15 = sadd.s32 1, %s11
  $region7: #{laplacian_loss.1} parent=0 // loop_footer_branch
    %10 = sbr.rel target = $region3
  $region8: #{laplacian_loss.1} parent=0 // loop_exit
    _

</llo_original>
